<compile_context>
chip_gen: v5e
topology: v5e:2x2
jax: 0.10.0
libtpu: 0.0.40
codegen_flags: <defaults>
</compile_context>

<pallas_src>
import functools
import math

import jax
import jax.numpy as jnp
from jax.experimental import pallas as pl
from jax.experimental.pallas import tpu as pltpu

LANE = 128
SUBLANE = 8


def _round_up(x, m):
    return (x + m - 1) // m * m


def actor_kernel(x_ref, noise_ref, w1_ref, b1_ref, w2_ref, b2_ref, w3_ref, b3_ref,
                 out_ref, *, c0, c1, action_dim, a_pad):
    A = action_dim
    bf16 = jnp.bfloat16
    f32 = jnp.float32

    # --- MLP hot path: three Linears on the MXU, bf16 operands + f32 accumulation.
    x = x_ref[...]
    h1 = jnp.maximum(
        jnp.dot(x.astype(bf16), w1_ref[...], preferred_element_type=f32)
        + b1_ref[...], 0.0)
    h2 = jnp.maximum(
        jnp.dot(h1.astype(bf16), w2_ref[...], preferred_element_type=f32)
        + b2_ref[...], 0.0)
    # Final layer: merged (mu | log_std) operand; the chunk(2, dim=-1) boundary is
    # the 128-aligned column `a_pad`, so both splits below are tile-aligned slices.
    o3 = (jnp.dot(h2.astype(bf16), w3_ref[...], preferred_element_type=f32)
          + b3_ref[...])

    # --- Narrow (tile_b, A) epilogue in f32: only real action lanes are touched,
    #     so no padding masks are needed anywhere.
    mu = o3[:, 0:A]
    # log_std squash folded into one fused multiply-add: c0 + c1 * tanh(.)
    log_std = c0 + c1 * jnp.tanh(o3[:, a_pad:a_pad + A])

    noise = noise_ref[...]                      # (tile_b, A), unpadded
    pi = mu + noise * jnp.exp(log_std)          # reparameterized sample
    mu_t = jnp.tanh(mu)
    pi_t = jnp.tanh(pi)

    # gaussian_logprob + tanh-squash correction fused into ONE lane reduction.
    per_lane = (-0.5 * noise * noise - log_std
                - jnp.log(jnp.maximum(1.0 - pi_t * pi_t, 0.0) + 1e-6))
    log_pi = (jnp.sum(per_lane, axis=-1, keepdims=True)
              - 0.5 * math.log(2.0 * math.pi) * A)

    # --- One contiguous, lane-dense output slab per tile; every strip offset is
    #     128-aligned so the stores are tile-aligned (masked only in width).
    out_ref[:, 0:A] = mu_t
    out_ref[:, a_pad:a_pad + A] = pi_t
    out_ref[:, 2 * a_pad:2 * a_pad + A] = log_std
    out_ref[:, 3 * a_pad:3 * a_pad + 1] = log_pi


def _pick_tile_b(B):
    # Keep >= 2 grid steps whenever reasonable so the 1-D "parallel" grid shards
    # across v7x's two TensorCores and the pipeline has something to overlap.
    # 128 matches v5e's native MXU M; 256 only for very large batches (v6e).
    if B <= 16:
        return _round_up(B, SUBLANE)
    if B <= 256:
        return _round_up(pl.cdiv(B, 2), SUBLANE)
    if B <= 4096:
        return 128
    return 256


@functools.partial(jax.jit, static_argnames=("log_std_min", "log_std_max", "action_dim"))
def actor_forward(x, padded_params, noise, *, log_std_min, log_std_max, action_dim):
    """x: (B, feat) encoded features; noise: (B, action_dim) standard normal
    sample (equivalent of torch.randn_like(mu), passed in for determinism)."""
    w1, b1, w2, b2, w3, b3 = padded_params
    B, feat = x.shape
    H_PAD = w1.shape[1]
    A_PAD = w3.shape[1] // 2
    A = int(action_dim)
    assert noise.shape == (B, A)

    OUT_W = 4 * A_PAD                       # [mu | pi | log_std | log_pi] strips
    tile_b = _pick_tile_b(B)
    num_tiles = pl.cdiv(B, tile_b)

    c1 = 0.5 * (float(log_std_max) - float(log_std_min))
    c0 = float(log_std_min) + c1

    kernel = functools.partial(actor_kernel, c0=c0, c1=c1, action_dim=A, a_pad=A_PAD)

    flops = 2 * B * (feat * H_PAD + H_PAD * H_PAD + H_PAD * 2 * A_PAD)
    bytes_accessed = (4 * x.size + 4 * noise.size + 4 * B * OUT_W
                      + 2 * (w1.size + w2.size + w3.size)
                      + 4 * (b1.size + b2.size + b3.size))

    out = pl.pallas_call(
        kernel,
        out_shape=jax.ShapeDtypeStruct((B, OUT_W), jnp.float32),
        grid=(num_tiles,),
        in_specs=[
            pl.BlockSpec((tile_b, feat), lambda i: (i, 0)),      # x tile (unpadded)
            pl.BlockSpec((tile_b, A), lambda i: (i, 0)),         # noise tile (unpadded)
            pl.BlockSpec((feat, H_PAD), lambda i: (0, 0)),       # w1 (grid-invariant)
            pl.BlockSpec((1, H_PAD), lambda i: (0, 0)),          # b1
            pl.BlockSpec((H_PAD, H_PAD), lambda i: (0, 0)),      # w2
            pl.BlockSpec((1, H_PAD), lambda i: (0, 0)),          # b2
            pl.BlockSpec((H_PAD, 2 * A_PAD), lambda i: (0, 0)),  # w3 (mu | log_std)
            pl.BlockSpec((1, 2 * A_PAD), lambda i: (0, 0)),      # b3
        ],
        out_specs=pl.BlockSpec((tile_b, OUT_W), lambda i: (i, 0)),
        compiler_params=pltpu.CompilerParams(
            dimension_semantics=("parallel",),
            # Above the 32 MiB scoped default, below v7x's 64 MiB physical VMEM.
            vmem_limit_bytes=48 * 1024 * 1024),
        cost_estimate=pl.CostEstimate(
            flops=flops,
            transcendentals=4 * B * A,
            bytes_accessed=bytes_accessed),
    )(x, noise, w1, b1, w2, b2, w3, b3)

    mu = out[:, 0:A]
    pi = out[:, A_PAD:A_PAD + A]
    log_std = out[:, 2 * A_PAD:2 * A_PAD + A]
    log_pi = out[:, 3 * A_PAD:3 * A_PAD + 1]
    return mu, pi, log_pi, log_std


def make_params(key, feat_dim, hidden_dim, action_dim):
    """weight_init semantics: orthogonal weights, zero biases.
    Weights stored as (in, out) = PyTorch (out, in) transposed."""
    k1, k2, k3 = jax.random.split(key, 3)
    ortho = jax.nn.initializers.orthogonal()
    w1 = ortho(k1, (feat_dim, hidden_dim), jnp.float32)
    b1 = jnp.zeros((hidden_dim,), jnp.float32)
    w2 = ortho(k2, (hidden_dim, hidden_dim), jnp.float32)
    b2 = jnp.zeros((hidden_dim,), jnp.float32)
    w3 = ortho(k3, (hidden_dim, 2 * action_dim), jnp.float32)
    b3 = jnp.zeros((2 * action_dim,), jnp.float32)
    return w1, b1, w2, b2, w3, b3


def pad_params(params, action_dim):
    """One-time host prep: cast weights to bf16, zero-pad only the lane (output)
    dims to 128, and merge the final layer into a single (H_PAD, 2*A_PAD) operand
    whose chunk(2, -1) boundary is 128-aligned (mu half in cols [0, A_PAD),
    log_std half in [A_PAD, 2*A_PAD)). Biases stay f32. The contraction dims
    (feat / hidden rows) are NOT padded — padded lanes of h1/h2 are exactly 0."""
    w1, b1, w2, b2, w3, b3 = params
    feat, hidden = w1.shape
    H_PAD = _round_up(hidden, LANE)
    A_PAD = _round_up(action_dim, LANE)
    bf16 = jnp.bfloat16

    w1p = jnp.zeros((feat, H_PAD), bf16).at[:, :hidden].set(w1.astype(bf16))
    b1p = jnp.zeros((1, H_PAD), jnp.float32).at[0, :hidden].set(b1)
    w2p = jnp.zeros((H_PAD, H_PAD), bf16).at[:hidden, :hidden].set(w2.astype(bf16))
    b2p = jnp.zeros((1, H_PAD), jnp.float32).at[0, :hidden].set(b2)

    w3p = jnp.zeros((H_PAD, 2 * A_PAD), bf16)
    w3p = w3p.at[:hidden, :action_dim].set(w3[:, :action_dim].astype(bf16))
    w3p = w3p.at[:hidden, A_PAD:A_PAD + action_dim].set(w3[:, action_dim:].astype(bf16))
    b3p = jnp.zeros((1, 2 * A_PAD), jnp.float32)
    b3p = b3p.at[0, :action_dim].set(b3[:action_dim])
    b3p = b3p.at[0, A_PAD:A_PAD + action_dim].set(b3[action_dim:])
    return w1p, b1p, w2p, b2p, w3p, b3p


def actor_reference(x, params, noise, *, log_std_min, log_std_max):
    """Pure-JAX reference mirroring the PyTorch Actor.forward, with the same
    mixed precision as the kernel (bf16 matmul operands, f32 accumulation and
    f32 epilogue)."""
    w1, b1, w2, b2, w3, b3 = params
    bf16 = jnp.bfloat16

    def mm(a, w):
        return jnp.dot(a.astype(bf16), w.astype(bf16),
                       preferred_element_type=jnp.float32)

    h1 = jax.nn.relu(mm(x, w1) + b1)
    h2 = jax.nn.relu(mm(h1, w2) + b2)
    out = mm(h2, w3) + b3
    A = noise.shape[-1]
    mu, log_std = out[:, :A], out[:, A:]
    log_std = jnp.tanh(log_std)
    log_std = log_std_min + 0.5 * (log_std_max - log_std_min) * (log_std + 1.0)
    pi = mu + noise * jnp.exp(log_std)
    log_pi = (jnp.sum(-0.5 * noise * noise - log_std, axis=-1, keepdims=True)
              - 0.5 * math.log(2.0 * math.pi) * A)
    mu_t, pi_t = jnp.tanh(mu), jnp.tanh(pi)
    log_pi = log_pi - jnp.sum(jnp.log(jax.nn.relu(1.0 - pi_t * pi_t) + 1e-6),
                              axis=-1, keepdims=True)
    return mu_t, pi_t, log_pi, log_std


if __name__ == "__main__":
    B = 8            # batch
    FEAT = 32        # encoder.out_dim (encoder treated as identity)
    HIDDEN = 32      # hidden_dim
    ACTION = 4       # action_shape[0]
    LOG_STD_MIN = -10.0
    LOG_STD_MAX = 2.0

    key = jax.random.PRNGKey(0)
    kx, kn, kp = jax.random.split(key, 3)

    x = jax.random.normal(kx, (B, FEAT), jnp.float32)
    noise = jax.random.normal(kn, (B, ACTION), jnp.float32)  # torch.randn_like(mu)
    params = make_params(kp, FEAT, HIDDEN, ACTION)
    padded = pad_params(params, ACTION)

    mu, pi, log_pi, log_std = actor_forward(
        x, padded, noise,
        log_std_min=LOG_STD_MIN, log_std_max=LOG_STD_MAX, action_dim=ACTION)
    jax.block_until_ready((mu, pi, log_pi, log_std))

    assert mu.shape == (B, ACTION)
    assert pi.shape == (B, ACTION)
    assert log_pi.shape == (B, 1)
    assert log_std.shape == (B, ACTION)

    mu_r, pi_r, log_pi_r, log_std_r = actor_reference(
        x, params, noise, log_std_min=LOG_STD_MIN, log_std_max=LOG_STD_MAX)
    for got, ref in ((mu, mu_r), (pi, pi_r), (log_pi, log_pi_r), (log_std, log_std_r)):
        assert jnp.all(jnp.isfinite(got))
        assert jnp.allclose(got, ref, atol=2e-2, rtol=2e-2)

    print("KERNEL_OK")
</pallas_src>

<mosaic_0001>
module attributes {stable_mosaic.version = 11 : i64} {
  func.func @actor_kernel(%arg0: i32, %arg1: memref<8x32xf32, #tpu.memory_space<vmem>>, %arg2: memref<8x4xf32, #tpu.memory_space<vmem>>, %arg3: memref<32x128xbf16, #tpu.memory_space<vmem>>, %arg4: memref<1x128xf32, #tpu.memory_space<vmem>>, %arg5: memref<128x128xbf16, #tpu.memory_space<vmem>>, %arg6: memref<1x128xf32, #tpu.memory_space<vmem>>, %arg7: memref<128x256xbf16, #tpu.memory_space<vmem>>, %arg8: memref<1x256xf32, #tpu.memory_space<vmem>>, %arg9: memref<8x512xf32, #tpu.memory_space<vmem>>) attributes {dimension_semantics = [#tpu.dimension_semantics<parallel>], iteration_bounds = array<i64: 1>, scalar_prefetch = 0 : i64, scratch_operands = 0 : i64, tpu.core_type = #tpu.core_type<tc>, window_params = [{transform_indices = @transform_0, window_bounds = array<i64: 8, 32>}, {transform_indices = @transform_1, window_bounds = array<i64: 8, 4>}, {pipeline_mode = #tpu.pipeline_mode<synchronous>, transform_indices = @transform_2, window_bounds = array<i64: 32, 128>}, {pipeline_mode = #tpu.pipeline_mode<synchronous>, transform_indices = @transform_3, window_bounds = array<i64: 1, 128>}, {pipeline_mode = #tpu.pipeline_mode<synchronous>, transform_indices = @transform_4, window_bounds = array<i64: 128, 128>}, {pipeline_mode = #tpu.pipeline_mode<synchronous>, transform_indices = @transform_5, window_bounds = array<i64: 1, 128>}, {pipeline_mode = #tpu.pipeline_mode<synchronous>, transform_indices = @transform_6, window_bounds = array<i64: 128, 256>}, {pipeline_mode = #tpu.pipeline_mode<synchronous>, transform_indices = @transform_7, window_bounds = array<i64: 1, 256>}, {transform_indices = @transform_8, window_bounds = array<i64: 8, 512>}]} {
    %c0 = arith.constant 0 : index
    %c0_0 = arith.constant 0 : index
    %0 = vector.load %arg1[%c0, %c0_0] : memref<8x32xf32, #tpu.memory_space<vmem>>, vector<8x32xf32>
    %1 = arith.truncf %0 : vector<8x32xf32> to vector<8x32xbf16>
    %c0_1 = arith.constant 0 : index
    %c0_2 = arith.constant 0 : index
    %2 = vector.load %arg3[%c0_1, %c0_2] : memref<32x128xbf16, #tpu.memory_space<vmem>>, vector<32x128xbf16>
    %cst = arith.constant dense<0.000000e+00> : vector<8x128xf32>
    %3 = tpu.matmul %1, %2, %cst {dimension_numbers = #tpu.dot_dimension_numbers<[1], [0], [0], [1], [0, 0, 1, 1], [], []>} : vector<8x32xbf16>, vector<32x128xbf16>, vector<8x128xf32> -> vector<8x128xf32>
    %c0_3 = arith.constant 0 : index
    %c0_4 = arith.constant 0 : index
    %4 = vector.load %arg4[%c0_3, %c0_4] : memref<1x128xf32, #tpu.memory_space<vmem>>, vector<1x128xf32>
    %5 = vector.broadcast %4 : vector<1x128xf32> to vector<8x128xf32>
    %6 = arith.addf %3, %5 : vector<8x128xf32>
    %cst_5 = arith.constant 0.000000e+00 : f32
    %7 = vector.broadcast %cst_5 : f32 to vector<8x128xf32>
    %8 = arith.maximumf %6, %7 : vector<8x128xf32>
    %9 = arith.truncf %8 : vector<8x128xf32> to vector<8x128xbf16>
    %c0_6 = arith.constant 0 : index
    %c0_7 = arith.constant 0 : index
    %10 = vector.load %arg5[%c0_6, %c0_7] : memref<128x128xbf16, #tpu.memory_space<vmem>>, vector<128x128xbf16>
    %cst_8 = arith.constant dense<0.000000e+00> : vector<8x128xf32>
    %11 = tpu.matmul %9, %10, %cst_8 {dimension_numbers = #tpu.dot_dimension_numbers<[1], [0], [0], [1], [0, 0, 1, 1], [], []>} : vector<8x128xbf16>, vector<128x128xbf16>, vector<8x128xf32> -> vector<8x128xf32>
    %c0_9 = arith.constant 0 : index
    %c0_10 = arith.constant 0 : index
    %12 = vector.load %arg6[%c0_9, %c0_10] : memref<1x128xf32, #tpu.memory_space<vmem>>, vector<1x128xf32>
    %13 = vector.broadcast %12 : vector<1x128xf32> to vector<8x128xf32>
    %14 = arith.addf %11, %13 : vector<8x128xf32>
    %cst_11 = arith.constant 0.000000e+00 : f32
    %15 = vector.broadcast %cst_11 : f32 to vector<8x128xf32>
    %16 = arith.maximumf %14, %15 : vector<8x128xf32>
    %17 = arith.truncf %16 : vector<8x128xf32> to vector<8x128xbf16>
    %c0_12 = arith.constant 0 : index
    %c0_13 = arith.constant 0 : index
    %18 = vector.load %arg7[%c0_12, %c0_13] : memref<128x256xbf16, #tpu.memory_space<vmem>>, vector<128x256xbf16>
    %cst_14 = arith.constant dense<0.000000e+00> : vector<8x256xf32>
    %19 = tpu.matmul %17, %18, %cst_14 {dimension_numbers = #tpu.dot_dimension_numbers<[1], [0], [0], [1], [0, 0, 1, 1], [], []>} : vector<8x128xbf16>, vector<128x256xbf16>, vector<8x256xf32> -> vector<8x256xf32>
    %c0_15 = arith.constant 0 : index
    %c0_16 = arith.constant 0 : index
    %20 = vector.load %arg8[%c0_15, %c0_16] : memref<1x256xf32, #tpu.memory_space<vmem>>, vector<1x256xf32>
    %21 = vector.broadcast %20 : vector<1x256xf32> to vector<8x256xf32>
    %22 = arith.addf %19, %21 : vector<8x256xf32>
    %23 = vector.extract_strided_slice %22 {offsets = [0, 0], sizes = [8, 4], strides = [1, 1]} : vector<8x256xf32> to vector<8x4xf32>
    %24 = vector.extract_strided_slice %22 {offsets = [0, 128], sizes = [8, 4], strides = [1, 1]} : vector<8x256xf32> to vector<8x4xf32>
    %25 = math.tanh %24 : vector<8x4xf32>
    %cst_17 = arith.constant 6.000000e+00 : f32
    %26 = vector.broadcast %cst_17 : f32 to vector<8x4xf32>
    %27 = arith.mulf %26, %25 : vector<8x4xf32>
    %cst_18 = arith.constant -4.000000e+00 : f32
    %28 = vector.broadcast %cst_18 : f32 to vector<8x4xf32>
    %29 = arith.addf %28, %27 : vector<8x4xf32>
    %c0_19 = arith.constant 0 : index
    %c0_20 = arith.constant 0 : index
    %30 = vector.load %arg2[%c0_19, %c0_20] : memref<8x4xf32, #tpu.memory_space<vmem>>, vector<8x4xf32>
    %31 = math.exp %29 : vector<8x4xf32>
    %32 = arith.mulf %30, %31 : vector<8x4xf32>
    %33 = arith.addf %23, %32 : vector<8x4xf32>
    %34 = math.tanh %23 : vector<8x4xf32>
    %35 = math.tanh %33 : vector<8x4xf32>
    %cst_21 = arith.constant -5.000000e-01 : f32
    %36 = vector.broadcast %cst_21 : f32 to vector<8x4xf32>
    %37 = arith.mulf %36, %30 : vector<8x4xf32>
    %38 = arith.mulf %37, %30 : vector<8x4xf32>
    %39 = arith.subf %38, %29 : vector<8x4xf32>
    %40 = arith.mulf %35, %35 : vector<8x4xf32>
    %cst_22 = arith.constant 1.000000e+00 : f32
    %41 = vector.broadcast %cst_22 : f32 to vector<8x4xf32>
    %42 = arith.subf %41, %40 : vector<8x4xf32>
    %cst_23 = arith.constant 0.000000e+00 : f32
    %43 = vector.broadcast %cst_23 : f32 to vector<8x4xf32>
    %44 = arith.maximumf %42, %43 : vector<8x4xf32>
    %cst_24 = arith.constant 9.99999997E-7 : f32
    %45 = vector.broadcast %cst_24 : f32 to vector<8x4xf32>
    %46 = arith.addf %44, %45 : vector<8x4xf32>
    %47 = math.log %46 : vector<8x4xf32>
    %48 = arith.subf %39, %47 : vector<8x4xf32>
    %cst_25 = arith.constant dense<0.000000e+00> : vector<8xf32>
    %49 = vector.multi_reduction <add>, %48, %cst_25 [1] : vector<8x4xf32> to vector<8xf32>
    %50 = vector.shape_cast %49 : vector<8xf32> to vector<8x1xf32>
    %cst_26 = arith.constant 3.67575407 : f32
    %51 = vector.broadcast %cst_26 : f32 to vector<8x1xf32>
    %52 = arith.subf %50, %51 : vector<8x1xf32>
    %c0_27 = arith.constant 0 : index
    %c0_28 = arith.constant 0 : index
    %53 = vector.load %arg9[%c0_27, %c0_28] : memref<8x512xf32, #tpu.memory_space<vmem>>, vector<8x4xf32>
    tpu.vector_store %arg9[%c0_27, %c0_28], %34 {strides = array<i32>} : memref<8x512xf32, #tpu.memory_space<vmem>>, vector<8x4xf32>,
    %c0_29 = arith.constant 0 : index
    %c128 = arith.constant 128 : index
    %54 = vector.load %arg9[%c0_29, %c128] : memref<8x512xf32, #tpu.memory_space<vmem>>, vector<8x4xf32>
    tpu.vector_store %arg9[%c0_29, %c128], %35 {strides = array<i32>} : memref<8x512xf32, #tpu.memory_space<vmem>>, vector<8x4xf32>,
    %c0_30 = arith.constant 0 : index
    %c256 = arith.constant 256 : index
    %55 = vector.load %arg9[%c0_30, %c256] : memref<8x512xf32, #tpu.memory_space<vmem>>, vector<8x4xf32>
    tpu.vector_store %arg9[%c0_30, %c256], %29 {strides = array<i32>} : memref<8x512xf32, #tpu.memory_space<vmem>>, vector<8x4xf32>,
    %c0_31 = arith.constant 0 : index
    %c384 = arith.constant 384 : index
    %56 = vector.load %arg9[%c0_31, %c384] : memref<8x512xf32, #tpu.memory_space<vmem>>, vector<8x1xf32>
    tpu.vector_store %arg9[%c0_31, %c384], %52 {strides = array<i32>} : memref<8x512xf32, #tpu.memory_space<vmem>>, vector<8x1xf32>,
    return
  }
  func.func @transform_0(%arg0: i32) -> (i32, i32) {
    %c0_i32 = arith.constant 0 : i32
    %c0_i32_0 = arith.constant 0 : i32
    return %arg0, %c0_i32 : i32, i32
  }
  func.func @transform_1(%arg0: i32) -> (i32, i32) {
    %c0_i32 = arith.constant 0 : i32
    %c0_i32_0 = arith.constant 0 : i32
    return %arg0, %c0_i32 : i32, i32
  }
  func.func @transform_2(%arg0: i32) -> (i32, i32) {
    %c0_i32 = arith.constant 0 : i32
    %c0_i32_0 = arith.constant 0 : i32
    %c0_i32_1 = arith.constant 0 : i32
    return %c0_i32, %c0_i32_0 : i32, i32
  }
  func.func @transform_3(%arg0: i32) -> (i32, i32) {
    %c0_i32 = arith.constant 0 : i32
    %c0_i32_0 = arith.constant 0 : i32
    %c0_i32_1 = arith.constant 0 : i32
    return %c0_i32, %c0_i32_0 : i32, i32
  }
  func.func @transform_4(%arg0: i32) -> (i32, i32) {
    %c0_i32 = arith.constant 0 : i32
    %c0_i32_0 = arith.constant 0 : i32
    %c0_i32_1 = arith.constant 0 : i32
    return %c0_i32, %c0_i32_0 : i32, i32
  }
  func.func @transform_5(%arg0: i32) -> (i32, i32) {
    %c0_i32 = arith.constant 0 : i32
    %c0_i32_0 = arith.constant 0 : i32
    %c0_i32_1 = arith.constant 0 : i32
    return %c0_i32, %c0_i32_0 : i32, i32
  }
  func.func @transform_6(%arg0: i32) -> (i32, i32) {
    %c0_i32 = arith.constant 0 : i32
    %c0_i32_0 = arith.constant 0 : i32
    %c0_i32_1 = arith.constant 0 : i32
    return %c0_i32, %c0_i32_0 : i32, i32
  }
  func.func @transform_7(%arg0: i32) -> (i32, i32) {
    %c0_i32 = arith.constant 0 : i32
    %c0_i32_0 = arith.constant 0 : i32
    %c0_i32_1 = arith.constant 0 : i32
    return %c0_i32, %c0_i32_0 : i32, i32
  }
  func.func @transform_8(%arg0: i32) -> (i32, i32) {
    %c0_i32 = arith.constant 0 : i32
    %c0_i32_0 = arith.constant 0 : i32
    return %arg0, %c0_i32 : i32, i32
  }
}

</mosaic_0001>

<llo_original>
// kernel: actor_forward.1
$region0: #{actor_forward.1}
  #allocation0 [shape = 'u32[]', space=smem, size = 0x4, offset = 0x4, fixed_abs, tag = 'smem constant byte address 0x4 - core index']
  #allocation1 [shape = 'u32[72,128]{1,0:T(1,128)}', space=vmem, size = 0x9000, scoped, tag = 'internal scratch']
  %s0 = inlined_call_operand.hbm [shape: f32[8,32], index: 0, kind: input, shape index: {}]
  %s1 = inlined_call_operand.vmem [shape: f32[8,4], index: 1, kind: input, shape index: {}]
  %s2 = inlined_call_operand.vmem [shape: bf16[32,128], index: 2, kind: input, shape index: {}]
  %s3 = inlined_call_operand.vmem [shape: f32[1,128], index: 3, kind: input, shape index: {}]
  %s4 = inlined_call_operand.hbm [shape: bf16[128,128], index: 4, kind: input, shape index: {}]
  %s5 = inlined_call_operand.hbm [shape: f32[1,128], index: 5, kind: input, shape index: {}]
  %s6 = inlined_call_operand.hbm [shape: bf16[128,256], index: 6, kind: input, shape index: {}]
  %s7 = inlined_call_operand.hbm [shape: f32[1,256], index: 7, kind: input, shape index: {}]
  %s8 = inlined_call_operand.vmem [shape: f32[8,512], index: 8, kind: output, shape index: {}]
  %s9 = sld [smem:[#allocation0]]
  $region62: #{actor_forward.1} parent=0
    _
  %s11 = ssub.s32 1, %s9
  %s12 = scalar_select 0, %s11, %s9
  $region1: #{actor_forward.1} parent=0
    #allocation2 [shape = 'u8[4096]{0}', space=vmem, size = 0x1000, scoped, tag = 'input window, operand 0, single buffered']
    #allocation3 [shape = 's32[1]{0}', space=sflag, size = 0x4, scoped, tag = 'scoped memory for actor_forward.1']
    #allocation4 [shape = 'u8[32768]{0}', space=vmem, size = 0x8000, scoped, tag = 'input window, operand 4, single buffered']
    #allocation5 [shape = 's32[1]{0}', space=sflag, size = 0x4, scoped, tag = 'scoped memory for actor_forward.1']
    #allocation6 [shape = 'u8[512]{0}', space=vmem, size = 0x400, scoped, tag = 'input window, operand 5, single buffered']
    #allocation7 [shape = 'u8[65536]{0}', space=vmem, size = 0x10000, scoped, tag = 'input window, operand 6, single buffered']
    #allocation8 [shape = 's32[1]{0}', space=sflag, size = 0x4, scoped, tag = 'scoped memory for actor_forward.1']
    #allocation9 [shape = 'u8[1024]{0}', space=vmem, size = 0x400, scoped, tag = 'input window, operand 7, single buffered']
    %13 = vsyncpa [#allocation3], 0
    %14 = vsyncpa [#allocation5], 0
    %15 = vsyncpa [#allocation8], 0
    // Predicated region
    $region2: #{actor_forward.1} parent=1 // pred_check
      _
    $region3: #{actor_forward.1} parent=1 // pred_check_branch
      %17 = sbr.rel (0) target = $region5
    $region4: #{actor_forward.1} parent=1 // pred_region
      %19 = vsyncadd [#allocation3], 0
      %s21 = sshll.u32 %s0, 4
      %s22 = int_to_ptr.hbm [resolvable:$true] %s21
      %s23 = sshll.u32 [#allocation2], 4
      %s24 = int_to_ptr.vmem [resolvable:$true] %s23
      %26 = dma.hbm_to_vmem [thread:$0]  %s22, 128, %s24, [#allocation3]
    $region5: #{actor_forward.1} parent=1 // pred_fallthru
      _
    // Predicated region
    $region6: #{actor_forward.1} parent=1 // pred_check
      _
    $region7: #{actor_forward.1} parent=1 // pred_check_branch
      %28 = sbr.rel (0) target = $region9
    $region8: #{actor_forward.1} parent=1 // pred_region
      _
    $region9: #{actor_forward.1} parent=1 // pred_fallthru
      _
    // Predicated region
    $region10: #{actor_forward.1} parent=1 // pred_check
      _
    $region11: #{actor_forward.1} parent=1 // pred_check_branch
      %30 = sbr.rel (0) target = $region13
    $region12: #{actor_forward.1} parent=1 // pred_region
      _
    $region13: #{actor_forward.1} parent=1 // pred_fallthru
      _
    // Predicated region
    $region14: #{actor_forward.1} parent=1 // pred_check
      _
    $region15: #{actor_forward.1} parent=1 // pred_check_branch
      %32 = sbr.rel (0) target = $region17
    $region16: #{actor_forward.1} parent=1 // pred_region
      _
    $region17: #{actor_forward.1} parent=1 // pred_fallthru
      _
    // Predicated region
    $region18: #{actor_forward.1} parent=1 // pred_check
      _
    $region19: #{actor_forward.1} parent=1 // pred_check_branch
      %34 = sbr.rel (0) target = $region21
    $region20: #{actor_forward.1} parent=1 // pred_region
      %36 = vsyncadd [#allocation5], 0
      %s37 = sshll.u32 %s4, 4
      %s38 = int_to_ptr.hbm [resolvable:$true] %s37
      %s39 = sshll.u32 [#allocation4], 4
      %s40 = int_to_ptr.vmem [resolvable:$true] %s39
      %45 = dma.hbm_to_vmem [thread:$0]  %s38, 1024, %s40, [#allocation5], 64, 64, 4
    $region21: #{actor_forward.1} parent=1 // pred_fallthru
      _
    // Predicated region
    $region22: #{actor_forward.1} parent=1 // pred_check
      _
    $region23: #{actor_forward.1} parent=1 // pred_check_branch
      %47 = sbr.rel (0) target = $region25
    $region24: #{actor_forward.1} parent=1 // pred_region
      %49 = vsyncadd [#allocation5], 0
      %s51 = sshll.u32 %s5, 4
      %s52 = int_to_ptr.hbm [resolvable:$true] %s51
      %s53 = sshll.u32 [#allocation6], 4
      %s54 = int_to_ptr.vmem [resolvable:$true] %s53
      %56 = dma.hbm_to_vmem [thread:$0]  %s52, 16, %s54, [#allocation5]
    $region25: #{actor_forward.1} parent=1 // pred_fallthru
      _
    // Predicated region
    $region26: #{actor_forward.1} parent=1 // pred_check
      _
    $region27: #{actor_forward.1} parent=1 // pred_check_branch
      %58 = sbr.rel (0) target = $region29
    $region28: #{actor_forward.1} parent=1 // pred_region
      %60 = vsyncadd [#allocation8], 0
      %s61 = sshll.u32 %s6, 4
      %s62 = int_to_ptr.hbm [resolvable:$true] %s61
      %s63 = sshll.u32 [#allocation7], 4
      %s64 = int_to_ptr.vmem [resolvable:$true] %s63
      %69 = dma.hbm_to_vmem [thread:$0]  %s62, 2048, %s64, [#allocation8], 128, 128, 8
    $region29: #{actor_forward.1} parent=1 // pred_fallthru
      _
    // Predicated region
    $region30: #{actor_forward.1} parent=1 // pred_check
      _
    $region31: #{actor_forward.1} parent=1 // pred_check_branch
      %71 = sbr.rel (0) target = $region33
    $region32: #{actor_forward.1} parent=1 // pred_region
      %73 = vsyncadd [#allocation8], 0
      %s75 = sshll.u32 %s7, 4
      %s76 = int_to_ptr.hbm [resolvable:$true] %s75
      %s77 = sshll.u32 [#allocation9], 4
      %s78 = int_to_ptr.vmem [resolvable:$true] %s77
      %80 = dma.hbm_to_vmem [thread:$0]  %s76, 32, %s78, [#allocation8]
    $region33: #{actor_forward.1} parent=1 // pred_fallthru
      _
    // Predicated region
    $region34: #{actor_forward.1} parent=1 // pred_check
      _
    $region35: #{actor_forward.1} parent=1 // pred_check_branch
      %82 = sbr.rel (0) target = $region37
    $region36: #{actor_forward.1} parent=1 // pred_region
      %84 = dma.done [#allocation3], 128
    $region37: #{actor_forward.1} parent=1 // pred_fallthru
      _
    // Predicated region
    $region38: #{actor_forward.1} parent=1 // pred_check
      _
    $region39: #{actor_forward.1} parent=1 // pred_check_branch
      %86 = sbr.rel (0) target = $region41
    $region40: #{actor_forward.1} parent=1 // pred_region
      %88 = dma.done [#allocation5], 1024
    $region41: #{actor_forward.1} parent=1 // pred_fallthru
      _
    // Predicated region
    $region42: #{actor_forward.1} parent=1 // pred_check
      _
    $region43: #{actor_forward.1} parent=1 // pred_check_branch
      %90 = sbr.rel (0) target = $region45
    $region44: #{actor_forward.1} parent=1 // pred_region
      %92 = dma.done [#allocation5], 16
    $region45: #{actor_forward.1} parent=1 // pred_fallthru
      _
    // Predicated region
    $region46: #{actor_forward.1} parent=1 // pred_check
      _
    $region47: #{actor_forward.1} parent=1 // pred_check_branch
      %94 = sbr.rel (0) target = $region49
    $region48: #{actor_forward.1} parent=1 // pred_region
      %96 = dma.done [#allocation8], 2048
    $region49: #{actor_forward.1} parent=1 // pred_fallthru
      _
    // Predicated region
    $region50: #{actor_forward.1} parent=1 // pred_check
      _
    $region51: #{actor_forward.1} parent=1 // pred_check_branch
      %98 = sbr.rel (0) target = $region53
    $region52: #{actor_forward.1} parent=1 // pred_region
      %100 = dma.done [#allocation8], 32
    $region53: #{actor_forward.1} parent=1 // pred_fallthru
      _
    %v102 = vld [vmem:[#allocation2] sm:$0xff]
    %v103 = vpack.c.bf16 %v102, %v102
    %v104 = vld [vmem:[%s2] sm:$0xf]
    %v105 = vld [vmem:[%s2 + $0x4] sm:$0xf]
    %v106 = vld [vmem:[%s2 + $0x8] sm:$0xf]
    %v107 = vld [vmem:[%s2 + $0xc] sm:$0xf]
    %v108 = vld [vmem:[%s3] sm:$0x1]
    %v110 = vperm.slane %v108, 0
    %v116 = vunpack.c.l.b16 %v104
    %v117 = vunpack.c.l.b16 %v105
    %v118 = vunpack.c.l.b16 %v106
    %v119 = vunpack.c.l.b16 %v107
    %v120 = vpack.c.b16 %v117, %v116
    %v121 = vpack.c.b16 %v119, %v118
    %vm124 = vcmask 261120
    %v126 = vsel %vm124, %v103, 0
    %128 = vmatpush.bf16.msra.mxu0 0
    %129 = vmatpush.bf16.msra.mxu0 0
    %130 = vmatpush.bf16.msra.mxu0 0
    %131 = vmatpush.bf16.msra.mxu0 0
    %132 = vmatpush.bf16.msra.mxu0 0
    %133 = vmatpush.bf16.msra.mxu0 0
    %134 = vmatpush.bf16.msra.mxu0 %v121
    %135 = vmatpush.bf16.msra.mxu0 %v120
    %136 = vmatmul.bf16.gmra.mxu0 %v126
    %v137 = vpop.f32.mrf.mxu0
    %v138 = vadd.f32 %v110, %v137
    %v139 = vpop.f32.mrf.mxu0
    %140 = vdwg.mxu0
    %v141 = vmax.f32 %v138, 0.0
    %v142 = vpack.c.bf16 %v141, %v141
    %v143 = vld [vmem:[#allocation4] sm:$0xf]
    %v144 = vld [vmem:[#allocation4 + $0x4] sm:$0xf]
    %v145 = vld [vmem:[#allocation4 + $0x8] sm:$0xf]
    %v146 = vld [vmem:[#allocation4 + $0xc] sm:$0xf]
    %v147 = vld [vmem:[#allocation4 + $0x10] sm:$0xf]
    %v148 = vld [vmem:[#allocation4 + $0x14] sm:$0xf]
    %v149 = vld [vmem:[#allocation4 + $0x18] sm:$0xf]
    %v150 = vld [vmem:[#allocation4 + $0x1c] sm:$0xf]
    %v151 = vld [vmem:[#allocation4 + $0x20] sm:$0xf]
    %v152 = vld [vmem:[#allocation4 + $0x24] sm:$0xf]
    %v153 = vld [vmem:[#allocation4 + $0x28] sm:$0xf]
    %v154 = vld [vmem:[#allocation4 + $0x2c] sm:$0xf]
    %v155 = vld [vmem:[#allocation4 + $0x30] sm:$0xf]
    %v156 = vld [vmem:[#allocation4 + $0x34] sm:$0xf]
    %v157 = vld [vmem:[#allocation4 + $0x38] sm:$0xf]
    %v158 = vld [vmem:[#allocation4 + $0x3c] sm:$0xf]
    %v159 = vld [vmem:[#allocation6] sm:$0x1]
    %v161 = vperm.slane %v159, 0
    %v179 = vunpack.c.l.b16 %v143
    %v180 = vunpack.c.l.b16 %v144
    %v181 = vunpack.c.l.b16 %v145
    %v182 = vunpack.c.l.b16 %v146
    %v183 = vunpack.c.l.b16 %v147
    %v184 = vunpack.c.l.b16 %v148
    %v185 = vunpack.c.l.b16 %v149
    %v186 = vunpack.c.l.b16 %v150
    %v187 = vunpack.c.l.b16 %v151
    %v188 = vunpack.c.l.b16 %v152
    %v189 = vunpack.c.l.b16 %v153
    %v190 = vunpack.c.l.b16 %v154
    %v191 = vunpack.c.l.b16 %v155
    %v192 = vunpack.c.l.b16 %v156
    %v193 = vunpack.c.l.b16 %v157
    %v194 = vunpack.c.l.b16 %v158
    %v195 = vpack.c.b16 %v180, %v179
    %v196 = vpack.c.b16 %v182, %v181
    %v197 = vpack.c.b16 %v184, %v183
    %v198 = vpack.c.b16 %v186, %v185
    %v199 = vpack.c.b16 %v188, %v187
    %v200 = vpack.c.b16 %v190, %v189
    %v201 = vpack.c.b16 %v192, %v191
    %v202 = vpack.c.b16 %v194, %v193
    %211 = vmatpush.bf16.msra.mxu0 %v202
    %212 = vmatpush.bf16.msra.mxu0 %v201
    %213 = vmatpush.bf16.msra.mxu0 %v200
    %214 = vmatpush.bf16.msra.mxu0 %v199
    %215 = vmatpush.bf16.msra.mxu0 %v198
    %216 = vmatpush.bf16.msra.mxu0 %v197
    %217 = vmatpush.bf16.msra.mxu0 %v196
    %218 = vmatpush.bf16.msra.mxu0 %v195
    %219 = vmatmul.bf16.gmra.mxu0 %v142
    %v220 = vpop.f32.mrf.mxu0
    %v221 = vadd.f32 %v161, %v220
    %v222 = vpop.f32.mrf.mxu0
    %223 = vdwg.mxu0
    %v224 = vmax.f32 %v221, 0.0
    %v225 = vpack.c.bf16 %v224, %v224
    %v226 = vld [vmem:[#allocation7] sm:$0xff]
    %v227 = vld [vmem:[#allocation7 + $0x8] sm:$0xff]
    %v228 = vld [vmem:[#allocation7 + $0x10] sm:$0xff]
    %v229 = vld [vmem:[#allocation7 + $0x18] sm:$0xff]
    %v230 = vld [vmem:[#allocation7 + $0x20] sm:$0xff]
    %v231 = vld [vmem:[#allocation7 + $0x28] sm:$0xff]
    %v232 = vld [vmem:[#allocation7 + $0x30] sm:$0xff]
    %v233 = vld [vmem:[#allocation7 + $0x38] sm:$0xff]
    %v234 = vld [vmem:[#allocation7 + $0x40] sm:$0xff]
    %v235 = vld [vmem:[#allocation7 + $0x48] sm:$0xff]
    %v236 = vld [vmem:[#allocation7 + $0x50] sm:$0xff]
    %v237 = vld [vmem:[#allocation7 + $0x58] sm:$0xff]
    %v238 = vld [vmem:[#allocation7 + $0x60] sm:$0xff]
    %v239 = vld [vmem:[#allocation7 + $0x68] sm:$0xff]
    %v240 = vld [vmem:[#allocation7 + $0x70] sm:$0xff]
    %v241 = vld [vmem:[#allocation7 + $0x78] sm:$0xff]
    %v242 = vld [vmem:[#allocation9] sm:$0x3]
    %v244 = vperm.slane %v242, 0
    %v245 = vperm.slane %v242, 1
    %v264 = vunpack.c.l.b16 %v226
    %v265 = vunpack.c.h.b16 %v226
    %v266 = vunpack.c.l.b16 %v227
    %v267 = vunpack.c.h.b16 %v227
    %v268 = vunpack.c.l.b16 %v228
    %v269 = vunpack.c.h.b16 %v228
    %v270 = vunpack.c.l.b16 %v229
    %v271 = vunpack.c.h.b16 %v229
    %v272 = vunpack.c.l.b16 %v230
    %v273 = vunpack.c.h.b16 %v230
    %v274 = vunpack.c.l.b16 %v231
    %v275 = vunpack.c.h.b16 %v231
    %v276 = vunpack.c.l.b16 %v232
    %v277 = vunpack.c.h.b16 %v232
    %v278 = vunpack.c.l.b16 %v233
    %v279 = vunpack.c.h.b16 %v233
    %v280 = vunpack.c.l.b16 %v234
    %v281 = vunpack.c.h.b16 %v234
    %v282 = vunpack.c.l.b16 %v235
    %v283 = vunpack.c.h.b16 %v235
    %v284 = vunpack.c.l.b16 %v236
    %v285 = vunpack.c.h.b16 %v236
    %v286 = vunpack.c.l.b16 %v237
    %v287 = vunpack.c.h.b16 %v237
    %v288 = vunpack.c.l.b16 %v238
    %v289 = vunpack.c.h.b16 %v238
    %v290 = vunpack.c.l.b16 %v239
    %v291 = vunpack.c.h.b16 %v239
    %v292 = vunpack.c.l.b16 %v240
    %v293 = vunpack.c.h.b16 %v240
    %v294 = vunpack.c.l.b16 %v241
    %v295 = vunpack.c.h.b16 %v241
    %v296 = vpack.c.b16 %v266, %v264
    %v297 = vpack.c.b16 %v267, %v265
    %v298 = vpack.c.b16 %v270, %v268
    %v299 = vpack.c.b16 %v271, %v269
    %v300 = vpack.c.b16 %v274, %v272
    %v301 = vpack.c.b16 %v275, %v273
    %v302 = vpack.c.b16 %v278, %v276
    %v303 = vpack.c.b16 %v279, %v277
    %v304 = vpack.c.b16 %v282, %v280
    %v305 = vpack.c.b16 %v283, %v281
    %v306 = vpack.c.b16 %v286, %v284
    %v307 = vpack.c.b16 %v287, %v285
    %v308 = vpack.c.b16 %v290, %v288
    %v309 = vpack.c.b16 %v291, %v289
    %v310 = vpack.c.b16 %v294, %v292
    %v311 = vpack.c.b16 %v295, %v293
    %328 = vmatpush.bf16.msra.mxu0 %v310
    %329 = vmatpush.bf16.msra.mxu0 %v308
    %330 = vmatpush.bf16.msra.mxu0 %v306
    %331 = vmatpush.bf16.msra.mxu0 %v304
    %332 = vmatpush.bf16.msra.mxu0 %v302
    %333 = vmatpush.bf16.msra.mxu0 %v300
    %334 = vmatpush.bf16.msra.mxu0 %v298
    %335 = vmatpush.bf16.msra.mxu0 %v296
    %336 = vmatmul.bf16.gmra.mxu0 %v225
    %v337 = vpop.f32.mrf.mxu0
    %v338 = vadd.f32 %v244, %v337
    %v339 = vpop.f32.mrf.mxu0
    %340 = vdwg.mxu0
    %341 = vmatpush.bf16.msra.mxu0 %v311
    %342 = vmatpush.bf16.msra.mxu0 %v309
    %343 = vmatpush.bf16.msra.mxu0 %v307
    %344 = vmatpush.bf16.msra.mxu0 %v305
    %345 = vmatpush.bf16.msra.mxu0 %v303
    %346 = vmatpush.bf16.msra.mxu0 %v301
    %347 = vmatpush.bf16.msra.mxu0 %v299
    %348 = vmatpush.bf16.msra.mxu0 %v297
    %349 = vmatmul.bf16.gmra.mxu0 %v225
    %v350 = vpop.f32.mrf.mxu0
    %v351 = vadd.f32 %v245, %v350
    %v352 = vpop.f32.mrf.mxu0
    %353 = vdwg.mxu0
    %v354 = vtanh.pop %v351
    %v355 = vmul.f32 %v354, 6.0
    %v356 = vadd.f32 %v355, -4.0
    %v357 = vld [vmem:[%s1] sm:$0xff]
    %v358 = vmul.f32 %v356, 1.442695
    %v359 = vpow.pop %v358
    %v360 = vmul.f32 %v357, %v359
    %v361 = vadd.f32 %v338, %v360
    %v362 = vtanh.pop %v338
    %v363 = vtanh.pop %v361
    %v364 = vmul.f32 %v357, -0.5
    %v365 = vmul.f32 %v364, %v357
    %v366 = vsub.f32 %v365, %v356
    %v367 = vmul.f32 %v363, %v363
    %v368 = vsub.f32 1.0, %v367
    %v369 = vmax.f32 %v368, 0.0
    %v370 = vadd.f32 %v369, 1e-06
    %v371 = vlog2.pop %v370
    %v372 = vmul.f32 %v371, 0.6931472
    %v373 = vsub.f32 %v366, %v372
    %vm374 = vcmask 31744
    %v375 = vsel %vm374, %v373, 0.0
    %376 = vadd.xlane.f32.xlu0 %v375
    %v377 = vpop.xlane.xlu0 %376
    %v378 = vsub.f32 %v377, 3.675754
    %379 = vst.msk [vmem:[%s8] sm:$0xff] %vm374, %v362
    %380 = vst.msk [vmem:[%s8 + $0x8] sm:$0xff] %vm374, %v363
    %381 = vst.msk [vmem:[%s8 + $0x10] sm:$0xff] %vm374, %v356
    %vm382 = vcmask 7168
    %383 = vst.msk [vmem:[%s8 + $0x18] sm:$0xff] %vm382, %v378
    // Predicated region
    $region54: #{actor_forward.1} parent=1 // pred_check
      _
    $region55: #{actor_forward.1} parent=1 // pred_check_branch
      %385 = sbr.rel (0) target = $region57
    $region56: #{actor_forward.1} parent=1 // pred_region
      _
    $region57: #{actor_forward.1} parent=1 // pred_fallthru
      _
    // Predicated region
    $region58: #{actor_forward.1} parent=1 // pred_check
      _
    $region59: #{actor_forward.1} parent=1 // pred_check_branch
      %387 = sbr.rel (0) target = $region61
    $region60: #{actor_forward.1} parent=1 // pred_region
      _
    $region61: #{actor_forward.1} parent=1 // pred_fallthru
      _
    %388 = vsyncpa [#allocation3], 1
    %389 = vsyncpa [#allocation5], 1
    %390 = vsyncpa [#allocation8], 1

</llo_original>
